<compile_context>
chip_gen: v5e
topology: v5e:2x2
jax: 0.10.0
libtpu: 0.0.40
codegen_flags: <defaults>
</compile_context>

<pallas_src>
import functools
import re

import jax
import jax.numpy as jnp
from jax.experimental import pallas as pl
from jax.experimental.pallas import tpu as pltpu


# ----------------------------------------------------------------------------
# generation-dependent knobs
# ----------------------------------------------------------------------------
@functools.lru_cache(maxsize=None)
def _kernel_config():
    """(tent_dtype, max_hw_tile, vmem_cap_bytes) chosen from the TPU generation."""
    gen = 6
    try:
        kind = jax.devices()[0].device_kind.lower()
        m = re.search(r"(\d+)", kind)
        if m:
            gen = int(m.group(1))
    except Exception:
        pass
    tent_dtype = jnp.bfloat16 if gen >= 6 else jnp.float32   # v5e: no bf16 VALU
    max_hw_tile = 4096 if gen >= 7 else 8192                 # v7x: 64 MiB VMEM
    vmem_cap = (48 << 20) if gen >= 7 else (64 << 20)
    return tent_dtype, max_hw_tile, vmem_cap


def _pick_hw_tile(hw_pad, max_tile):
    """Largest 128-multiple tile <= max_tile that divides hw_pad (hw_pad % 128 == 0)."""
    if hw_pad <= max_tile:
        return hw_pad
    start = (max_tile // 128) * 128
    for t in range(start, 127, -128):
        if hw_pad % t == 0:
            return t
    return 128


# ----------------------------------------------------------------------------
# batch-only work (hoisted out of the HW-tile loop per the perf review)
# ----------------------------------------------------------------------------
def _linear_heads(b_z, params):
    wp, bp, wa, ba, wt, bt = params
    patch = jnp.tanh(jnp.dot(b_z, wp) + bp)
    alpha = jax.nn.sigmoid(jnp.dot(b_z, wa) + ba)
    theta = jnp.dot(b_z, wt) + bt
    return patch * alpha, alpha, theta


def _base_grid(H, W):
    """align_corners=True normalized canvas coordinates, flattened (1, HW)."""
    xs = jnp.linspace(-1.0, 1.0, W, dtype=jnp.float32)
    ys = jnp.linspace(-1.0, 1.0, H, dtype=jnp.float32)
    Yg, Xg = jnp.meshgrid(ys, xs, indexing="ij")
    return Xg.reshape(1, -1), Yg.reshape(1, -1)


# ----------------------------------------------------------------------------
# kernel
# ----------------------------------------------------------------------------
def _scene_patch_kernel(ops_ref, theta_ref, bg_ref, y_ref, mask_ref, *,
                        patch_size, channels, block_b, tent_dtype):
    P, C, Bt = patch_size, channels, block_b
    PP = P * P
    f32, bf16 = jnp.float32, jnp.bfloat16
    tent_is_bf16 = jnp.dtype(tent_dtype) == jnp.dtype(bf16)

    xs = bg_ref[0:1, :]                       # (1, hw_t) canvas x in [-1, 1]
    ys = bg_ref[1:2, :]                       # (1, hw_t) canvas y in [-1, 1]
    half = 0.5 * (P - 1)
    # patch pixel coordinates 0..P-1 as a (P, 1) column (shared by x/y tents)
    pix = jax.lax.broadcasted_iota(jnp.int32, (P, 1), 0).astype(f32)
    b0 = pl.program_id(0) * Bt                # absolute batch offset (theta is flat SMEM)

    def body(i, carry):
        # ---- F.affine_grid (align_corners=True): sample coords in patch pixel space
        base = (b0 + i) * 8
        t0 = theta_ref[base + 0]
        t1 = theta_ref[base + 1]
        t2 = theta_ref[base + 2]
        t3 = theta_ref[base + 3]
        t4 = theta_ref[base + 4]
        t5 = theta_ref[base + 5]
        ix = (t0 * xs + t1 * ys + t2 + 1.0) * half          # (1, hw_t) f32
        iy = (t3 * xs + t4 * ys + t5 + 1.0) * half

        # ---- F.grid_sample (bilinear, zeros padding): separable tent
        wx = jnp.maximum(0.0, 1.0 - jnp.abs(ix - pix)).astype(tent_dtype)   # (P, hw_t)
        wy = jnp.maximum(0.0, 1.0 - jnp.abs(iy - pix)).astype(tent_dtype)   # (P, hw_t)
        wgt = (wy[:, None, :] * wx[None, :, :]).reshape(PP, wx.shape[1])    # (PP, hw_t)
        wgt_b = wgt if tent_is_bf16 else wgt.astype(bf16)

        # ---- one MXU matmul resamples [patch*alpha ; alpha] together
        res = jnp.dot(ops_ref[i], wgt_b, preferred_element_type=f32)        # (2C, hw_t)
        y_ref[i] = res[:C]
        mask_ref[i] = res[C:]
        return carry

    jax.lax.fori_loop(0, Bt, body, 0, unroll=True)


# ----------------------------------------------------------------------------
# wrapper
# ----------------------------------------------------------------------------
def scene_patch_forward(b_z, params, canvas_size, *, patch_size, patch_channels):
    """Pallas implementation of ScenePatch.forward(b_z, canvas_size) -> (y, mask)."""
    B, in_dims = b_z.shape
    P, C = patch_size, patch_channels
    PP = P * P
    _, _, H, W = canvas_size
    HW = H * W
    f32, bf16 = jnp.float32, jnp.bfloat16

    tent_dtype, max_hw_tile, vmem_cap = _kernel_config()

    # batch-only work: one tiny XLA matmul + activations (hoisted out of the HW loop)
    pa, alpha, theta = _linear_heads(b_z, params)
    ops = jnp.concatenate([pa.reshape(B, C, PP), alpha.reshape(B, C, PP)],
                          axis=1).astype(bf16)                    # (B, 2C, PP)
    theta_s = jnp.pad(theta.astype(f32), ((0, 0), (0, 2)))        # (B, 8)

    Xf, Yf = _base_grid(H, W)
    bg = jnp.concatenate([Xf, Yf], axis=0)                        # (2, HW)

    # ---- blocking / padding (no full-HW or full-B fallback tiles) ----
    if B % 8 == 0:
        Bt, B_pad = 8, B
    elif B < 8:
        Bt, B_pad = B, B
    else:
        Bt, B_pad = 8, ((B + 7) // 8) * 8
    HW_pad = ((HW + 127) // 128) * 128
    hw_t = _pick_hw_tile(HW_pad, max_hw_tile)

    if B_pad != B:
        ops = jnp.pad(ops, ((0, B_pad - B), (0, 0), (0, 0)))
        theta_s = jnp.pad(theta_s, ((0, B_pad - B), (0, 0)))
    if HW_pad != HW:
        bg = jnp.pad(bg, ((0, 0), (0, HW_pad - HW)))
    theta_flat = theta_s.reshape(-1)                              # 1D -> cheap SMEM layout

    grid = (B_pad // Bt, HW_pad // hw_t)

    # ---- VMEM budget: one grid step (double-buffered I/O + in-kernel temps) ----
    tb = 2 if jnp.dtype(tent_dtype) == jnp.dtype(bf16) else 4
    io_bytes = 2 * (Bt * 2 * C * PP * 2          # ops block (bf16), double-buffered
                    + 2 * hw_t * 4               # base grid tile
                    + 2 * Bt * C * hw_t * 4)     # two f32 output blocks
    tmp_bytes = (2 * PP * hw_t * tb              # tent + outer-product temp
                 + 2 * P * hw_t * (4 + tb)       # wx/wy (f32 + cast)
                 + 2 * C * hw_t * 4              # matmul result
                 + 4 * hw_t * 4)                 # ix/iy
    vmem_need = io_bytes + tmp_bytes
    vmem_limit = min(max(2 * vmem_need, 16 << 20), vmem_cap)
    vmem_limit = max(vmem_limit, vmem_need + (4 << 20))   # never clamp below the need

    flops = (2 * B_pad * (2 * C) * PP * HW_pad           # resampling matmul (MXU)
             + (PP + 8 * P) * B_pad * HW_pad)            # separable tent (VPU)
    bytes_accessed = (B_pad * 2 * C * PP * 2 + B_pad * 8 * 4 + 2 * HW_pad * 4
                      + 2 * B_pad * C * HW_pad * 4)

    kernel = functools.partial(_scene_patch_kernel, patch_size=P, channels=C,
                               block_b=Bt, tent_dtype=tent_dtype)

    y_full, m_full = pl.pallas_call(
        kernel,
        out_shape=(jax.ShapeDtypeStruct((B_pad, C, HW_pad), f32),
                   jax.ShapeDtypeStruct((B_pad, C, HW_pad), f32)),
        grid_spec=pltpu.PrefetchScalarGridSpec(
            num_scalar_prefetch=0,
            grid=grid,
            in_specs=[
                pl.BlockSpec((Bt, 2 * C, PP), lambda b, t: (b, 0, 0)),     # ops (bf16)
                pl.BlockSpec(memory_space=pltpu.MemorySpace.SMEM),         # theta scalars
                pl.BlockSpec((2, hw_t), lambda b, t: (0, t)),              # base grid
            ],
            out_specs=[
                pl.BlockSpec((Bt, C, hw_t), lambda b, t: (b, 0, t)),       # y
                pl.BlockSpec((Bt, C, hw_t), lambda b, t: (b, 0, t)),       # mask
            ],
        ),
        compiler_params=pltpu.CompilerParams(
            dimension_semantics=("parallel", "parallel"),
            vmem_limit_bytes=int(vmem_limit),
        ),
        cost_estimate=pl.CostEstimate(flops=flops, transcendentals=0,
                                      bytes_accessed=bytes_accessed),
    )(ops, theta_flat, bg)

    if B_pad != B or HW_pad != HW:
        y_full = y_full[:B, :, :HW]
        m_full = m_full[:B, :, :HW]
    return y_full.reshape(B, C, H, W), m_full.reshape(B, C, H, W)


# ----------------------------------------------------------------------------
# references
# ----------------------------------------------------------------------------
def _reference_like_kernel(b_z, params, canvas_size, *, patch_size, patch_channels):
    """Mirrors the kernel's operand path (separable tent in tent_dtype, bf16 MXU)."""
    tent_dtype, _, _ = _kernel_config()
    P, C = patch_size, patch_channels
    B, _, H, W = canvas_size
    f32, bf16 = jnp.float32, jnp.bfloat16

    pa, alpha, theta = _linear_heads(b_z, params)
    Xf, Yf = _base_grid(H, W)
    half = 0.5 * (P - 1)
    ix = (theta[:, 0:1] * Xf + theta[:, 1:2] * Yf + theta[:, 2:3] + 1.0) * half
    iy = (theta[:, 3:4] * Xf + theta[:, 4:5] * Yf + theta[:, 5:6] + 1.0) * half
    pix = jnp.arange(P, dtype=f32)
    wx = jnp.maximum(0.0, 1.0 - jnp.abs(ix[:, None, :] - pix[None, :, None])).astype(tent_dtype)
    wy = jnp.maximum(0.0, 1.0 - jnp.abs(iy[:, None, :] - pix[None, :, None])).astype(tent_dtype)
    wgt = (wy[:, :, None, :] * wx[:, None, :, :]).reshape(B, P * P, H * W).astype(bf16)
    y = jnp.einsum("bck,bko->bco", pa.reshape(B, C, -1).astype(bf16), wgt,
                   preferred_element_type=f32).reshape(B, C, H, W)
    m = jnp.einsum("bck,bko->bco", alpha.reshape(B, C, -1).astype(bf16), wgt,
                   preferred_element_type=f32).reshape(B, C, H, W)
    return y, m


def _reference_semantic(b_z, params, canvas_size, *, patch_size, patch_channels):
    """Independent f32 check of F.affine_grid + F.grid_sample (bilinear, zeros,
    align_corners=True) semantics: dense tent, HIGHEST-precision matmul."""
    P, C = patch_size, patch_channels
    B, _, H, W = canvas_size
    f32 = jnp.float32
    pa, alpha, theta = _linear_heads(b_z, params)
    Xf, Yf = _base_grid(H, W)
    half = 0.5 * (P - 1)
    ix = (theta[:, 0:1] * Xf + theta[:, 1:2] * Yf + theta[:, 2:3] + 1.0) * half
    iy = (theta[:, 3:4] * Xf + theta[:, 4:5] * Yf + theta[:, 5:6] + 1.0) * half
    px = (jnp.arange(P * P) % P).astype(f32)
    py = (jnp.arange(P * P) // P).astype(f32)
    wgt = (jnp.maximum(0.0, 1.0 - jnp.abs(ix[:, None, :] - px[None, :, None])) *
           jnp.maximum(0.0, 1.0 - jnp.abs(iy[:, None, :] - py[None, :, None])))
    y = jnp.einsum("bck,bko->bco", pa.reshape(B, C, -1), wgt,
                   precision=jax.lax.Precision.HIGHEST,
                   preferred_element_type=f32).reshape(B, C, H, W)
    m = jnp.einsum("bck,bko->bco", alpha.reshape(B, C, -1), wgt,
                   precision=jax.lax.Precision.HIGHEST,
                   preferred_element_type=f32).reshape(B, C, H, W)
    return y, m


def _check(b_z, params, canvas_size, *, patch_size, patch_channels):
    kw = dict(patch_size=patch_size, patch_channels=patch_channels)
    y, mask = scene_patch_forward(b_z, params, canvas_size, **kw)
    jax.block_until_ready((y, mask))
    y_lk, m_lk = _reference_like_kernel(b_z, params, canvas_size, **kw)
    y_sm, m_sm = _reference_semantic(b_z, params, canvas_size, **kw)
    assert y.shape == canvas_size and mask.shape == canvas_size
    # like-for-like (same bf16 operand path as the kernel)
    assert float(jnp.max(jnp.abs(y - y_lk))) < 2e-3
    assert float(jnp.max(jnp.abs(mask - m_lk))) < 2e-3
    # independent f32 affine_grid / grid_sample semantics (looser: bf16 tent/operands)
    assert float(jnp.max(jnp.abs(y - y_sm))) < 2e-2
    assert float(jnp.max(jnp.abs(mask - m_sm))) < 2e-2


if __name__ == "__main__":
    B, in_dims = 2, 32
    patch_size, patch_channels = 8, 4
    area = patch_size ** 2 * patch_channels
    canvas_size = (B, patch_channels, 16, 16)

    key = jax.random.PRNGKey(0)
    k_z, k_wp, k_bp, k_wa, k_wt = jax.random.split(key, 5)
    bound = float(1.0 / (in_dims ** 0.5))

    b_z = jax.random.normal(k_z, (B, in_dims), dtype=jnp.float32)
    # `patch` Linear: default (uniform) init, stored transposed as (in_dims, area)
    wp = jax.random.uniform(k_wp, (in_dims, area), jnp.float32, -bound, bound)
    bp = jax.random.uniform(k_bp, (area,), jnp.float32, -bound, bound)

    # Case 1: module as constructed (alpha / transform zero-init, identity affine bias)
    params_init = (wp, bp,
                   jnp.zeros((in_dims, area), jnp.float32), jnp.zeros((area,), jnp.float32),
                   jnp.zeros((in_dims, 6), jnp.float32),
                   jnp.array([1.0, 0.0, 0.0, 0.0, 1.0, 0.0], jnp.float32))
    _check(b_z, params_init, canvas_size,
           patch_size=patch_size, patch_channels=patch_channels)

    # Case 2: perturbed weights -> non-identity affine transform + non-trivial alpha
    params_trained = (wp, bp,
                      jax.random.uniform(k_wa, (in_dims, area), jnp.float32, -bound, bound),
                      jnp.zeros((area,), jnp.float32),
                      jax.random.uniform(k_wt, (in_dims, 6), jnp.float32, -0.1, 0.1),
                      jnp.array([1.0, 0.0, 0.0, 0.0, 1.0, 0.0], jnp.float32))
    _check(b_z, params_trained, canvas_size,
           patch_size=patch_size, patch_channels=patch_channels)

    print("KERNEL_OK")
</pallas_src>

<mosaic_0001>
module attributes {stable_mosaic.version = 11 : i64} {
  func.func @_scene_patch_kernel(%arg0: i32, %arg1: i32, %arg2: memref<2x8x64xbf16, #tpu.memory_space<vmem>>, %arg3: memref<16xf32, #tpu.memory_space<smem>>, %arg4: memref<2x256xf32, #tpu.memory_space<vmem>>, %arg5: memref<2x4x256xf32, #tpu.memory_space<vmem>>, %arg6: memref<2x4x256xf32, #tpu.memory_space<vmem>>) attributes {dimension_semantics = [#tpu.dimension_semantics<parallel>, #tpu.dimension_semantics<parallel>], iteration_bounds = array<i64: 1, 1>, scalar_prefetch = 0 : i64, scratch_operands = 0 : i64, tpu.core_type = #tpu.core_type<tc>, window_params = [{transform_indices = @transform_0, window_bounds = array<i64: 2, 8, 64>}, {transform_indices = @transform_1, window_bounds = array<i64: 16>}, {transform_indices = @transform_2, window_bounds = array<i64: 2, 256>}, {transform_indices = @transform_3, window_bounds = array<i64: 2, 4, 256>}, {transform_indices = @transform_4, window_bounds = array<i64: 2, 4, 256>}]} {
    %c0 = arith.constant 0 : index
    %c0_0 = arith.constant 0 : index
    %0 = vector.load %arg4[%c0, %c0_0] : memref<2x256xf32, #tpu.memory_space<vmem>>, vector<1x256xf32>
    %c1 = arith.constant 1 : index
    %c0_1 = arith.constant 0 : index
    %1 = vector.load %arg4[%c1, %c0_1] : memref<2x256xf32, #tpu.memory_space<vmem>>, vector<1x256xf32>
    %2 = tpu.iota {dimensions = array<i32: 0>} : vector<8x1xi32>
    %3 = arith.sitofp %2 : vector<8x1xi32> to vector<8x1xf32>
    %c2_i32 = arith.constant 2 : i32
    %4 = arith.muli %arg0, %c2_i32 : i32
    %c0_i32 = arith.constant 0 : i32
    %5 = arith.addi %4, %c0_i32 : i32
    %c8_i32 = arith.constant 8 : i32
    %6 = arith.muli %5, %c8_i32 : i32
    %c0_i32_2 = arith.constant 0 : i32
    %7 = arith.addi %6, %c0_i32_2 : i32
    %8 = arith.index_cast %7 : i32 to index
    %9 = memref.load %arg3[%8] : memref<16xf32, #tpu.memory_space<smem>>
    %c1_i32 = arith.constant 1 : i32
    %10 = arith.addi %6, %c1_i32 : i32
    %11 = arith.index_cast %10 : i32 to index
    %12 = memref.load %arg3[%11] : memref<16xf32, #tpu.memory_space<smem>>
    %c2_i32_3 = arith.constant 2 : i32
    %13 = arith.addi %6, %c2_i32_3 : i32
    %14 = arith.index_cast %13 : i32 to index
    %15 = memref.load %arg3[%14] : memref<16xf32, #tpu.memory_space<smem>>
    %c3_i32 = arith.constant 3 : i32
    %16 = arith.addi %6, %c3_i32 : i32
    %17 = arith.index_cast %16 : i32 to index
    %18 = memref.load %arg3[%17] : memref<16xf32, #tpu.memory_space<smem>>
    %c4_i32 = arith.constant 4 : i32
    %19 = arith.addi %6, %c4_i32 : i32
    %20 = arith.index_cast %19 : i32 to index
    %21 = memref.load %arg3[%20] : memref<16xf32, #tpu.memory_space<smem>>
    %c5_i32 = arith.constant 5 : i32
    %22 = arith.addi %6, %c5_i32 : i32
    %23 = arith.index_cast %22 : i32 to index
    %24 = memref.load %arg3[%23] : memref<16xf32, #tpu.memory_space<smem>>
    %25 = vector.broadcast %9 : f32 to vector<1x256xf32>
    %26 = arith.mulf %25, %0 : vector<1x256xf32>
    %27 = vector.broadcast %12 : f32 to vector<1x256xf32>
    %28 = arith.mulf %27, %1 : vector<1x256xf32>
    %29 = arith.addf %26, %28 : vector<1x256xf32>
    %30 = vector.broadcast %15 : f32 to vector<1x256xf32>
    %31 = arith.addf %29, %30 : vector<1x256xf32>
    %cst = arith.constant 1.000000e+00 : f32
    %32 = vector.broadcast %cst : f32 to vector<1x256xf32>
    %33 = arith.addf %31, %32 : vector<1x256xf32>
    %cst_4 = arith.constant 3.500000e+00 : f32
    %34 = vector.broadcast %cst_4 : f32 to vector<1x256xf32>
    %35 = arith.mulf %33, %34 : vector<1x256xf32>
    %36 = vector.broadcast %18 : f32 to vector<1x256xf32>
    %37 = arith.mulf %36, %0 : vector<1x256xf32>
    %38 = vector.broadcast %21 : f32 to vector<1x256xf32>
    %39 = arith.mulf %38, %1 : vector<1x256xf32>
    %40 = arith.addf %37, %39 : vector<1x256xf32>
    %41 = vector.broadcast %24 : f32 to vector<1x256xf32>
    %42 = arith.addf %40, %41 : vector<1x256xf32>
    %cst_5 = arith.constant 1.000000e+00 : f32
    %43 = vector.broadcast %cst_5 : f32 to vector<1x256xf32>
    %44 = arith.addf %42, %43 : vector<1x256xf32>
    %cst_6 = arith.constant 3.500000e+00 : f32
    %45 = vector.broadcast %cst_6 : f32 to vector<1x256xf32>
    %46 = arith.mulf %44, %45 : vector<1x256xf32>
    %47 = vector.broadcast %35 : vector<1x256xf32> to vector<8x256xf32>
    %48 = vector.broadcast %3 : vector<8x1xf32> to vector<8x256xf32>
    %49 = arith.subf %47, %48 : vector<8x256xf32>
    %50 = math.absf %49 : vector<8x256xf32>
    %cst_7 = arith.constant 1.000000e+00 : f32
    %51 = vector.broadcast %cst_7 : f32 to vector<8x256xf32>
    %52 = arith.subf %51, %50 : vector<8x256xf32>
    %cst_8 = arith.constant 0.000000e+00 : f32
    %53 = vector.broadcast %cst_8 : f32 to vector<8x256xf32>
    %54 = arith.maximumf %53, %52 : vector<8x256xf32>
    %55 = arith.truncf %54 : vector<8x256xf32> to vector<8x256xbf16>
    %56 = vector.broadcast %46 : vector<1x256xf32> to vector<8x256xf32>
    %57 = vector.broadcast %3 : vector<8x1xf32> to vector<8x256xf32>
    %58 = arith.subf %56, %57 : vector<8x256xf32>
    %59 = math.absf %58 : vector<8x256xf32>
    %cst_9 = arith.constant 1.000000e+00 : f32
    %60 = vector.broadcast %cst_9 : f32 to vector<8x256xf32>
    %61 = arith.subf %60, %59 : vector<8x256xf32>
    %cst_10 = arith.constant 0.000000e+00 : f32
    %62 = vector.broadcast %cst_10 : f32 to vector<8x256xf32>
    %63 = arith.maximumf %62, %61 : vector<8x256xf32>
    %64 = arith.truncf %63 : vector<8x256xf32> to vector<8x256xbf16>
    %65 = vector.shape_cast %64 : vector<8x256xbf16> to vector<8x1x256xbf16>
    %66 = vector.shape_cast %55 : vector<8x256xbf16> to vector<1x8x256xbf16>
    %67 = vector.broadcast %65 : vector<8x1x256xbf16> to vector<8x8x256xbf16>
    %68 = vector.broadcast %66 : vector<1x8x256xbf16> to vector<8x8x256xbf16>
    %69 = arith.mulf %67, %68 : vector<8x8x256xbf16>
    %70 = vector.shape_cast %69 : vector<8x8x256xbf16> to vector<64x256xbf16>
    %71 = arith.index_cast %c0_i32 : i32 to index
    %c0_11 = arith.constant 0 : index
    %c0_12 = arith.constant 0 : index
    %72 = vector.load %arg2[%71, %c0_11, %c0_12] : memref<2x8x64xbf16, #tpu.memory_space<vmem>>, vector<1x8x64xbf16>
    %73 = vector.shape_cast %72 : vector<1x8x64xbf16> to vector<8x64xbf16>
    %cst_13 = arith.constant dense<0.000000e+00> : vector<8x256xf32>
    %74 = tpu.matmul %73, %70, %cst_13 {dimension_numbers = #tpu.dot_dimension_numbers<[1], [0], [0], [1], [0, 0, 1, 1], [], []>} : vector<8x64xbf16>, vector<64x256xbf16>, vector<8x256xf32> -> vector<8x256xf32>
    %75 = vector.extract_strided_slice %74 {offsets = [0, 0], sizes = [4, 256], strides = [1, 1]} : vector<8x256xf32> to vector<4x256xf32>
    %76 = arith.index_cast %c0_i32 : i32 to index
    %c0_14 = arith.constant 0 : index
    %c0_15 = arith.constant 0 : index
    %77 = vector.load %arg5[%76, %c0_14, %c0_15] : memref<2x4x256xf32, #tpu.memory_space<vmem>>, vector<1x4x256xf32>
    %78 = vector.shape_cast %77 : vector<1x4x256xf32> to vector<4x256xf32>
    %79 = vector.shape_cast %75 : vector<4x256xf32> to vector<1x4x256xf32>
    tpu.vector_store %arg5[%76, %c0_14, %c0_15], %79 {strides = array<i32>} : memref<2x4x256xf32, #tpu.memory_space<vmem>>, vector<1x4x256xf32>,
    %80 = vector.extract_strided_slice %74 {offsets = [4, 0], sizes = [4, 256], strides = [1, 1]} : vector<8x256xf32> to vector<4x256xf32>
    %81 = arith.index_cast %c0_i32 : i32 to index
    %c0_16 = arith.constant 0 : index
    %c0_17 = arith.constant 0 : index
    %82 = vector.load %arg6[%81, %c0_16, %c0_17] : memref<2x4x256xf32, #tpu.memory_space<vmem>>, vector<1x4x256xf32>
    %83 = vector.shape_cast %82 : vector<1x4x256xf32> to vector<4x256xf32>
    %84 = vector.shape_cast %80 : vector<4x256xf32> to vector<1x4x256xf32>
    tpu.vector_store %arg6[%81, %c0_16, %c0_17], %84 {strides = array<i32>} : memref<2x4x256xf32, #tpu.memory_space<vmem>>, vector<1x4x256xf32>,
    %c1_i32_18 = arith.constant 1 : i32
    %85 = arith.addi %4, %c1_i32_18 : i32
    %c8_i32_19 = arith.constant 8 : i32
    %86 = arith.muli %85, %c8_i32_19 : i32
    %c0_i32_20 = arith.constant 0 : i32
    %87 = arith.addi %86, %c0_i32_20 : i32
    %88 = arith.index_cast %87 : i32 to index
    %89 = memref.load %arg3[%88] : memref<16xf32, #tpu.memory_space<smem>>
    %c1_i32_21 = arith.constant 1 : i32
    %90 = arith.addi %86, %c1_i32_21 : i32
    %91 = arith.index_cast %90 : i32 to index
    %92 = memref.load %arg3[%91] : memref<16xf32, #tpu.memory_space<smem>>
    %c2_i32_22 = arith.constant 2 : i32
    %93 = arith.addi %86, %c2_i32_22 : i32
    %94 = arith.index_cast %93 : i32 to index
    %95 = memref.load %arg3[%94] : memref<16xf32, #tpu.memory_space<smem>>
    %c3_i32_23 = arith.constant 3 : i32
    %96 = arith.addi %86, %c3_i32_23 : i32
    %97 = arith.index_cast %96 : i32 to index
    %98 = memref.load %arg3[%97] : memref<16xf32, #tpu.memory_space<smem>>
    %c4_i32_24 = arith.constant 4 : i32
    %99 = arith.addi %86, %c4_i32_24 : i32
    %100 = arith.index_cast %99 : i32 to index
    %101 = memref.load %arg3[%100] : memref<16xf32, #tpu.memory_space<smem>>
    %c5_i32_25 = arith.constant 5 : i32
    %102 = arith.addi %86, %c5_i32_25 : i32
    %103 = arith.index_cast %102 : i32 to index
    %104 = memref.load %arg3[%103] : memref<16xf32, #tpu.memory_space<smem>>
    %105 = vector.broadcast %89 : f32 to vector<1x256xf32>
    %106 = arith.mulf %105, %0 : vector<1x256xf32>
    %107 = vector.broadcast %92 : f32 to vector<1x256xf32>
    %108 = arith.mulf %107, %1 : vector<1x256xf32>
    %109 = arith.addf %106, %108 : vector<1x256xf32>
    %110 = vector.broadcast %95 : f32 to vector<1x256xf32>
    %111 = arith.addf %109, %110 : vector<1x256xf32>
    %cst_26 = arith.constant 1.000000e+00 : f32
    %112 = vector.broadcast %cst_26 : f32 to vector<1x256xf32>
    %113 = arith.addf %111, %112 : vector<1x256xf32>
    %cst_27 = arith.constant 3.500000e+00 : f32
    %114 = vector.broadcast %cst_27 : f32 to vector<1x256xf32>
    %115 = arith.mulf %113, %114 : vector<1x256xf32>
    %116 = vector.broadcast %98 : f32 to vector<1x256xf32>
    %117 = arith.mulf %116, %0 : vector<1x256xf32>
    %118 = vector.broadcast %101 : f32 to vector<1x256xf32>
    %119 = arith.mulf %118, %1 : vector<1x256xf32>
    %120 = arith.addf %117, %119 : vector<1x256xf32>
    %121 = vector.broadcast %104 : f32 to vector<1x256xf32>
    %122 = arith.addf %120, %121 : vector<1x256xf32>
    %cst_28 = arith.constant 1.000000e+00 : f32
    %123 = vector.broadcast %cst_28 : f32 to vector<1x256xf32>
    %124 = arith.addf %122, %123 : vector<1x256xf32>
    %cst_29 = arith.constant 3.500000e+00 : f32
    %125 = vector.broadcast %cst_29 : f32 to vector<1x256xf32>
    %126 = arith.mulf %124, %125 : vector<1x256xf32>
    %127 = vector.broadcast %115 : vector<1x256xf32> to vector<8x256xf32>
    %128 = vector.broadcast %3 : vector<8x1xf32> to vector<8x256xf32>
    %129 = arith.subf %127, %128 : vector<8x256xf32>
    %130 = math.absf %129 : vector<8x256xf32>
    %cst_30 = arith.constant 1.000000e+00 : f32
    %131 = vector.broadcast %cst_30 : f32 to vector<8x256xf32>
    %132 = arith.subf %131, %130 : vector<8x256xf32>
    %cst_31 = arith.constant 0.000000e+00 : f32
    %133 = vector.broadcast %cst_31 : f32 to vector<8x256xf32>
    %134 = arith.maximumf %133, %132 : vector<8x256xf32>
    %135 = arith.truncf %134 : vector<8x256xf32> to vector<8x256xbf16>
    %136 = vector.broadcast %126 : vector<1x256xf32> to vector<8x256xf32>
    %137 = vector.broadcast %3 : vector<8x1xf32> to vector<8x256xf32>
    %138 = arith.subf %136, %137 : vector<8x256xf32>
    %139 = math.absf %138 : vector<8x256xf32>
    %cst_32 = arith.constant 1.000000e+00 : f32
    %140 = vector.broadcast %cst_32 : f32 to vector<8x256xf32>
    %141 = arith.subf %140, %139 : vector<8x256xf32>
    %cst_33 = arith.constant 0.000000e+00 : f32
    %142 = vector.broadcast %cst_33 : f32 to vector<8x256xf32>
    %143 = arith.maximumf %142, %141 : vector<8x256xf32>
    %144 = arith.truncf %143 : vector<8x256xf32> to vector<8x256xbf16>
    %145 = vector.shape_cast %144 : vector<8x256xbf16> to vector<8x1x256xbf16>
    %146 = vector.shape_cast %135 : vector<8x256xbf16> to vector<1x8x256xbf16>
    %147 = vector.broadcast %145 : vector<8x1x256xbf16> to vector<8x8x256xbf16>
    %148 = vector.broadcast %146 : vector<1x8x256xbf16> to vector<8x8x256xbf16>
    %149 = arith.mulf %147, %148 : vector<8x8x256xbf16>
    %150 = vector.shape_cast %149 : vector<8x8x256xbf16> to vector<64x256xbf16>
    %151 = arith.index_cast %c1_i32_18 : i32 to index
    %c0_34 = arith.constant 0 : index
    %c0_35 = arith.constant 0 : index
    %152 = vector.load %arg2[%151, %c0_34, %c0_35] : memref<2x8x64xbf16, #tpu.memory_space<vmem>>, vector<1x8x64xbf16>
    %153 = vector.shape_cast %152 : vector<1x8x64xbf16> to vector<8x64xbf16>
    %cst_36 = arith.constant dense<0.000000e+00> : vector<8x256xf32>
    %154 = tpu.matmul %153, %150, %cst_36 {dimension_numbers = #tpu.dot_dimension_numbers<[1], [0], [0], [1], [0, 0, 1, 1], [], []>} : vector<8x64xbf16>, vector<64x256xbf16>, vector<8x256xf32> -> vector<8x256xf32>
    %155 = vector.extract_strided_slice %154 {offsets = [0, 0], sizes = [4, 256], strides = [1, 1]} : vector<8x256xf32> to vector<4x256xf32>
    %156 = arith.index_cast %c1_i32_18 : i32 to index
    %c0_37 = arith.constant 0 : index
    %c0_38 = arith.constant 0 : index
    %157 = vector.load %arg5[%156, %c0_37, %c0_38] : memref<2x4x256xf32, #tpu.memory_space<vmem>>, vector<1x4x256xf32>
    %158 = vector.shape_cast %157 : vector<1x4x256xf32> to vector<4x256xf32>
    %159 = vector.shape_cast %155 : vector<4x256xf32> to vector<1x4x256xf32>
    tpu.vector_store %arg5[%156, %c0_37, %c0_38], %159 {strides = array<i32>} : memref<2x4x256xf32, #tpu.memory_space<vmem>>, vector<1x4x256xf32>,
    %160 = vector.extract_strided_slice %154 {offsets = [4, 0], sizes = [4, 256], strides = [1, 1]} : vector<8x256xf32> to vector<4x256xf32>
    %161 = arith.index_cast %c1_i32_18 : i32 to index
    %c0_39 = arith.constant 0 : index
    %c0_40 = arith.constant 0 : index
    %162 = vector.load %arg6[%161, %c0_39, %c0_40] : memref<2x4x256xf32, #tpu.memory_space<vmem>>, vector<1x4x256xf32>
    %163 = vector.shape_cast %162 : vector<1x4x256xf32> to vector<4x256xf32>
    %164 = vector.shape_cast %160 : vector<4x256xf32> to vector<1x4x256xf32>
    tpu.vector_store %arg6[%161, %c0_39, %c0_40], %164 {strides = array<i32>} : memref<2x4x256xf32, #tpu.memory_space<vmem>>, vector<1x4x256xf32>,
    %c2_i32_41 = arith.constant 2 : i32
    return
  }
  func.func @transform_0(%arg0: i32, %arg1: i32) -> (i32, i32, i32) {
    %c0_i32 = arith.constant 0 : i32
    %c0_i32_0 = arith.constant 0 : i32
    %c0_i32_1 = arith.constant 0 : i32
    return %arg0, %c0_i32, %c0_i32_0 : i32, i32, i32
  }
  func.func @transform_1(%arg0: i32, %arg1: i32) -> i32 {
    %c0_i32 = arith.constant 0 : i32
    %c0_i32_0 = arith.constant 0 : i32
    return %c0_i32 : i32
  }
  func.func @transform_2(%arg0: i32, %arg1: i32) -> (i32, i32) {
    %c0_i32 = arith.constant 0 : i32
    %c0_i32_0 = arith.constant 0 : i32
    return %c0_i32, %arg1 : i32, i32
  }
  func.func @transform_3(%arg0: i32, %arg1: i32) -> (i32, i32, i32) {
    %c0_i32 = arith.constant 0 : i32
    %c0_i32_0 = arith.constant 0 : i32
    return %arg0, %c0_i32, %arg1 : i32, i32, i32
  }
  func.func @transform_4(%arg0: i32, %arg1: i32) -> (i32, i32, i32) {
    %c0_i32 = arith.constant 0 : i32
    %c0_i32_0 = arith.constant 0 : i32
    return %arg0, %c0_i32, %arg1 : i32, i32, i32
  }
}

</mosaic_0001>

<llo_original>
// kernel: tpu_custom_call.1
$region0: #{tpu_custom_call.1}
  #allocation0 [shape = 'u32[]', space=smem, size = 0x4, offset = 0x4, fixed_abs, tag = 'smem constant byte address 0x4 - core index']
  #allocation1 [shape = 'u32[72,128]{1,0:T(1,128)}', space=vmem, size = 0x9000, scoped, tag = 'internal scratch']
  %s0 = inlined_call_operand.hbm [shape: bf16[2,8,64], index: 0, kind: input, shape index: {}]
  %s1 = inlined_call_operand.hbm [shape: f32[16], index: 1, kind: input, shape index: {}]
  %s2 = inlined_call_operand.hbm [shape: f32[2,256], index: 2, kind: input, shape index: {}]
  %s3 = inlined_call_operand.hbm [shape: f32[2,4,256], index: 3, kind: output, shape index: {0}]
  %s4 = inlined_call_operand.hbm [shape: f32[2,4,256], index: 4, kind: output, shape index: {1}]
  %5 = xla_tuple %s3, %s4
  %s6 = sld [smem:[#allocation0]]
  $region42: #{tpu_custom_call.1} parent=0
    _
  %s8 = ssub.s32 1, %s6
  %s9 = scalar_select 0, %s8, %s6
  $region1: #{tpu_custom_call.1} parent=0
    #allocation2 [shape = 'u8[4096]{0}', space=vmem, size = 0x1000, scoped, tag = 'input window, operand 0, single buffered']
    #allocation3 [shape = 's32[1]{0}', space=sflag, size = 0x4, scoped, tag = 'scoped memory for tpu_custom_call.1']
    #allocation4 [shape = 's32[1]{0}', space=sflag, size = 0x4, scoped, tag = 'scoped memory for tpu_custom_call.1']
    #allocation5 [shape = 's32[1]{0}', space=sflag, size = 0x4, scoped, tag = 'scoped memory for tpu_custom_call.1']
    #allocation6 [shape = 'u8[512]{0}', space=smem, size = 0x200, scoped, tag = 'input window, operand 1, single buffered']
    #allocation7 [shape = 'u8[2048]{0}', space=vmem, size = 0x800, scoped, tag = 'input window, operand 2, single buffered']
    #allocation8 [shape = 's32[1]{0}', space=sflag, size = 0x4, scoped, tag = 'scoped memory for tpu_custom_call.1']
    #allocation9 [shape = 'u8[8192]{0}', space=vmem, size = 0x2000, scoped, tag = 'output window, operand 0, single buffered']
    #allocation10 [shape = 'u8[8192]{0}', space=vmem, size = 0x2000, scoped, tag = 'output window, operand 1, single buffered']
    #allocation11 [shape = 's32[1]{0}', space=sflag, size = 0x4, scoped, tag = 'scoped memory for tpu_custom_call.1']
    %10 = vsyncpa [#allocation3], 0
    %11 = vsyncpa [#allocation5], 0
    %12 = vsyncpa [#allocation8], 0
    %13 = vsyncpa [#allocation4], 0
    %14 = vsyncpa [#allocation11], 0
    // Predicated region
    $region2: #{tpu_custom_call.1} parent=1 // pred_check
      _
    $region3: #{tpu_custom_call.1} parent=1 // pred_check_branch
      %16 = sbr.rel (0) target = $region5
    $region4: #{tpu_custom_call.1} parent=1 // pred_region
      %18 = vsyncadd [#allocation3], 0
      %s19 = sshll.u32 %s0, 4
      %s20 = int_to_ptr.hbm [resolvable:$true] %s19
      %s21 = sshll.u32 [#allocation2], 4
      %s22 = int_to_ptr.vmem [resolvable:$true] %s21
      %27 = dma.hbm_to_vmem [thread:$0]  %s20, 128, %s22, [#allocation3], 64, 64, 4
    $region5: #{tpu_custom_call.1} parent=1 // pred_fallthru
      _
    // Predicated region
    $region6: #{tpu_custom_call.1} parent=1 // pred_check
      _
    $region7: #{tpu_custom_call.1} parent=1 // pred_check_branch
      %29 = sbr.rel (0) target = $region9
    $region8: #{tpu_custom_call.1} parent=1 // pred_region
      %31 = vsyncadd [#allocation5], 0
      %s33 = sshll.u32 %s1, 4
      %s34 = int_to_ptr.hbm [resolvable:$true] %s33
      %36 = dma.hbm_to_smem %s34, 16, [#allocation6], [#allocation5]
    $region9: #{tpu_custom_call.1} parent=1 // pred_fallthru
      _
    // Predicated region
    $region10: #{tpu_custom_call.1} parent=1 // pred_check
      _
    $region11: #{tpu_custom_call.1} parent=1 // pred_check_branch
      %38 = sbr.rel (0) target = $region13
    $region12: #{tpu_custom_call.1} parent=1 // pred_region
      %40 = vsyncadd [#allocation8], 0
      %s42 = sshll.u32 %s2, 4
      %s43 = int_to_ptr.hbm [resolvable:$true] %s42
      %s44 = sshll.u32 [#allocation7], 4
      %s45 = int_to_ptr.vmem [resolvable:$true] %s44
      %47 = dma.hbm_to_vmem [thread:$0]  %s43, 64, %s45, [#allocation8]
    $region13: #{tpu_custom_call.1} parent=1 // pred_fallthru
      _
    // Predicated region
    $region14: #{tpu_custom_call.1} parent=1 // pred_check
      _
    $region15: #{tpu_custom_call.1} parent=1 // pred_check_branch
      %49 = sbr.rel (0) target = $region17
    $region16: #{tpu_custom_call.1} parent=1 // pred_region
      %51 = dma.done [#allocation3], 128
    $region17: #{tpu_custom_call.1} parent=1 // pred_fallthru
      _
    // Predicated region
    $region18: #{tpu_custom_call.1} parent=1 // pred_check
      _
    $region19: #{tpu_custom_call.1} parent=1 // pred_check_branch
      %53 = sbr.rel (0) target = $region21
    $region20: #{tpu_custom_call.1} parent=1 // pred_region
      %55 = dma.done [#allocation5], 16
    $region21: #{tpu_custom_call.1} parent=1 // pred_fallthru
      _
    // Predicated region
    $region22: #{tpu_custom_call.1} parent=1 // pred_check
      _
    $region23: #{tpu_custom_call.1} parent=1 // pred_check_branch
      %57 = sbr.rel (0) target = $region25
    $region24: #{tpu_custom_call.1} parent=1 // pred_region
      %59 = dma.done [#allocation8], 64
    $region25: #{tpu_custom_call.1} parent=1 // pred_fallthru
      _
    %60 = sfence
    %v62 = vld [vmem:[#allocation7] ss:$2 sm:$0x3]
    %s63 = scalar_lea.vmem [#allocation7], 1
    %v64 = vld [vmem:[%s63] ss:$2 sm:$0x3]
    %v65 = vlaneseq
    %v66 = vshrl.u32 %v65, 7
    %v67 = vcvt.s32.f32 %v66
    %s68 = smul.u32 0, 2
    %s69 = smul.u32 0, 16
    %s70 = sld [smem:[#allocation6 + %s69]]
    %s71 = sadd.s32 %s69, 1
    %s72 = sld [smem:[#allocation6 + %s71]]
    %s73 = sadd.s32 %s69, 2
    %s74 = sld [smem:[#allocation6 + %s73]]
    %s75 = sadd.s32 %s69, 3
    %s76 = sld [smem:[#allocation6 + %s75]]
    %s77 = sadd.s32 %s69, 4
    %s78 = sld [smem:[#allocation6 + %s77]]
    %s79 = sadd.s32 %s69, 5
    %s80 = sld [smem:[#allocation6 + %s79]]
    %v81 = vstv %s70
    %v82 = vmul.f32 %v81, %v62
    %v83 = vstv %s72
    %v84 = vmul.f32 %v83, %v64
    %v85 = vadd.f32 %v82, %v84
    %v86 = vstv %s74
    %v87 = vadd.f32 %v85, %v86
    %v88 = vadd.f32 %v87, 1.0
    %v89 = vmul.f32 %v88, 3.5
    %v90 = vstv %s76
    %v91 = vmul.f32 %v90, %v62
    %v92 = vstv %s78
    %v93 = vmul.f32 %v92, %v64
    %v94 = vadd.f32 %v91, %v93
    %v95 = vstv %s80
    %v96 = vadd.f32 %v94, %v95
    %v97 = vadd.f32 %v96, 1.0
    %v98 = vmul.f32 %v97, 3.5
    %v100 = vperm.slane %v89, 0
    %v101 = vperm.slane %v89, 1
    %v104 = vsub.f32 %v100, %v67
    %v105 = vsub.f32 %v101, %v67
    %v106 = vand.u32 2147483647, %v104
    %v107 = vand.u32 2147483647, %v105
    %v108 = vsub.f32 1.0, %v106
    %v109 = vsub.f32 1.0, %v107
    %v110 = vmax.f32 %v108, 0.0
    %v111 = vmax.f32 %v109, 0.0
    %v112 = vpack.c.bf16 %v111, %v110
    %v114 = vperm.slane %v98, 0
    %v115 = vperm.slane %v98, 1
    %v118 = vsub.f32 %v114, %v67
    %v119 = vsub.f32 %v115, %v67
    %v120 = vand.u32 2147483647, %v118
    %v121 = vand.u32 2147483647, %v119
    %v122 = vsub.f32 1.0, %v120
    %v123 = vsub.f32 1.0, %v121
    %v124 = vmax.f32 %v122, 0.0
    %v125 = vmax.f32 %v123, 0.0
    %v126 = vpack.c.bf16 %v125, %v124
    %v128 = vrot.slane %v126, 3
    %vm129 = vcmask 1040384
    %v132 = vsel %vm129, %v126, %v128
    %vm134 = vcmask 1041409
    %v135 = vsel %vm134, %v126, %v128
    %v137 = vrot.slane %v135, 1
    %vm138 = vcmask 1042434
    %v139 = vsel %vm138, %v126, %v128
    %v141 = vrot.slane %v139, 2
    %vm142 = vcmask 1043459
    %v143 = vsel %vm142, %v126, %v128
    %v145 = vrot.slane %v143, 3
    %v146 = vunpack.i.l.s16 %v132
    %v147 = vunpack.i.h.s16 %v132
    %v148 = vunpack.i.l.s16 %v137
    %v149 = vunpack.i.h.s16 %v137
    %v150 = vunpack.i.l.s16 %v141
    %v151 = vunpack.i.h.s16 %v141
    %v152 = vunpack.i.l.s16 %v145
    %v153 = vunpack.i.h.s16 %v145
    %v154 = vpack.i.b16 %v146, %v146
    %v155 = vpack.i.b16 %v147, %v147
    %v156 = vpack.i.b16 %v148, %v148
    %v157 = vpack.i.b16 %v149, %v149
    %v158 = vpack.i.b16 %v150, %v150
    %v159 = vpack.i.b16 %v151, %v151
    %v160 = vpack.i.b16 %v152, %v152
    %v161 = vpack.i.b16 %v153, %v153
    %v162 = vperm.slane %v154, 0
    %v163 = vperm.slane %v154, 1
    %v164 = vperm.slane %v155, 0
    %v165 = vperm.slane %v155, 1
    %v166 = vperm.slane %v156, 0
    %v167 = vperm.slane %v156, 1
    %v168 = vperm.slane %v157, 0
    %v169 = vperm.slane %v157, 1
    %v170 = vperm.slane %v158, 0
    %v171 = vperm.slane %v158, 1
    %v172 = vperm.slane %v159, 0
    %v173 = vperm.slane %v159, 1
    %v174 = vperm.slane %v160, 0
    %v175 = vperm.slane %v160, 1
    %v176 = vperm.slane %v161, 0
    %v177 = vperm.slane %v161, 1
    %v179 = vpack.i.b16 %v162, %v162
    %v181 = vperm.slane %v179, 0
    %v183 = vpack.i.b16 %v163, %v163
    %v185 = vperm.slane %v183, 0
    %v187 = vpack.i.b16 %v164, %v164
    %v189 = vperm.slane %v187, 0
    %v191 = vpack.i.b16 %v165, %v165
    %v193 = vperm.slane %v191, 0
    %v195 = vpack.i.b16 %v166, %v166
    %v197 = vperm.slane %v195, 0
    %v199 = vpack.i.b16 %v167, %v167
    %v201 = vperm.slane %v199, 0
    %v203 = vpack.i.b16 %v168, %v168
    %v205 = vperm.slane %v203, 0
    %v207 = vpack.i.b16 %v169, %v169
    %v209 = vperm.slane %v207, 0
    %v211 = vpack.i.b16 %v170, %v170
    %v213 = vperm.slane %v211, 0
    %v215 = vpack.i.b16 %v171, %v171
    %v217 = vperm.slane %v215, 0
    %v219 = vpack.i.b16 %v172, %v172
    %v221 = vperm.slane %v219, 0
    %v223 = vpack.i.b16 %v173, %v173
    %v225 = vperm.slane %v223, 0
    %v227 = vpack.i.b16 %v174, %v174
    %v229 = vperm.slane %v227, 0
    %v231 = vpack.i.b16 %v175, %v175
    %v233 = vperm.slane %v231, 0
    %v235 = vpack.i.b16 %v176, %v176
    %v237 = vperm.slane %v235, 0
    %v239 = vpack.i.b16 %v177, %v177
    %v241 = vperm.slane %v239, 0
    %v242 = vunpack.c.l.bf16 %v181
    %v243 = vunpack.c.l.bf16 %v185
    %v244 = vunpack.c.l.bf16 %v189
    %v245 = vunpack.c.l.bf16 %v193
    %v246 = vunpack.c.l.bf16 %v197
    %v247 = vunpack.c.l.bf16 %v201
    %v248 = vunpack.c.l.bf16 %v205
    %v249 = vunpack.c.l.bf16 %v209
    %v250 = vunpack.c.l.bf16 %v213
    %v251 = vunpack.c.l.bf16 %v217
    %v252 = vunpack.c.l.bf16 %v221
    %v253 = vunpack.c.l.bf16 %v225
    %v254 = vunpack.c.l.bf16 %v229
    %v255 = vunpack.c.l.bf16 %v233
    %v256 = vunpack.c.l.bf16 %v237
    %v257 = vunpack.c.l.bf16 %v241
    %v258 = vunpack.c.l.bf16 %v112
    %v259 = vunpack.c.h.bf16 %v112
    %v260 = vmul.f32 %v242, %v258
    %v261 = vmul.f32 %v243, %v259
    %v262 = vmul.f32 %v244, %v258
    %v263 = vmul.f32 %v245, %v259
    %v264 = vmul.f32 %v246, %v258
    %v265 = vmul.f32 %v247, %v259
    %v266 = vmul.f32 %v248, %v258
    %v267 = vmul.f32 %v249, %v259
    %v268 = vmul.f32 %v250, %v258
    %v269 = vmul.f32 %v251, %v259
    %v270 = vmul.f32 %v252, %v258
    %v271 = vmul.f32 %v253, %v259
    %v272 = vmul.f32 %v254, %v258
    %v273 = vmul.f32 %v255, %v259
    %v274 = vmul.f32 %v256, %v258
    %v275 = vmul.f32 %v257, %v259
    %v276 = vpack.c.bf16 %v261, %v260
    %v277 = vpack.c.bf16 %v263, %v262
    %v278 = vpack.c.bf16 %v265, %v264
    %v279 = vpack.c.bf16 %v267, %v266
    %v280 = vpack.c.bf16 %v269, %v268
    %v281 = vpack.c.bf16 %v271, %v270
    %v282 = vpack.c.bf16 %v273, %v272
    %v283 = vpack.c.bf16 %v275, %v274
    %v284 = vld [vmem:[#allocation2] sm:$0xf]
    %v293 = vunpack.c.l.b16 %v276
    %v294 = vunpack.c.h.b16 %v276
    %v295 = vunpack.c.l.b16 %v277
    %v296 = vunpack.c.h.b16 %v277
    %v297 = vunpack.c.l.b16 %v278
    %v298 = vunpack.c.h.b16 %v278
    %v299 = vunpack.c.l.b16 %v279
    %v300 = vunpack.c.h.b16 %v279
    %v301 = vunpack.c.l.b16 %v280
    %v302 = vunpack.c.h.b16 %v280
    %v303 = vunpack.c.l.b16 %v281
    %v304 = vunpack.c.h.b16 %v281
    %v305 = vunpack.c.l.b16 %v282
    %v306 = vunpack.c.h.b16 %v282
    %v307 = vunpack.c.l.b16 %v283
    %v308 = vunpack.c.h.b16 %v283
    %v309 = vpack.c.b16 %v295, %v293
    %v310 = vpack.c.b16 %v296, %v294
    %v311 = vpack.c.b16 %v299, %v297
    %v312 = vpack.c.b16 %v300, %v298
    %v313 = vpack.c.b16 %v303, %v301
    %v314 = vpack.c.b16 %v304, %v302
    %v315 = vpack.c.b16 %v307, %v305
    %v316 = vpack.c.b16 %v308, %v306
    %vm325 = vcmask 523264
    %v327 = vsel %vm325, %v284, 0
    %329 = vmatpush.bf16.msra.mxu0 0
    %330 = vmatpush.bf16.msra.mxu0 0
    %331 = vmatpush.bf16.msra.mxu0 0
    %332 = vmatpush.bf16.msra.mxu0 0
    %333 = vmatpush.bf16.msra.mxu0 %v315
    %334 = vmatpush.bf16.msra.mxu0 %v313
    %335 = vmatpush.bf16.msra.mxu0 %v311
    %336 = vmatpush.bf16.msra.mxu0 %v309
    %337 = vmatmul.bf16.gmra.mxu0 %v327
    %v338 = vpop.f32.mrf.mxu0
    %v339 = vadd.f32 0.0, %v338
    %v340 = vpop.f32.mrf.mxu0
    %341 = vdwg.mxu0
    %342 = vmatpush.bf16.msra.mxu0 0
    %343 = vmatpush.bf16.msra.mxu0 0
    %344 = vmatpush.bf16.msra.mxu0 0
    %345 = vmatpush.bf16.msra.mxu0 0
    %346 = vmatpush.bf16.msra.mxu0 %v316
    %347 = vmatpush.bf16.msra.mxu0 %v314
    %348 = vmatpush.bf16.msra.mxu0 %v312
    %349 = vmatpush.bf16.msra.mxu0 %v310
    %350 = vmatmul.bf16.gmra.mxu0 %v327
    %v351 = vpop.f32.mrf.mxu0
    %v352 = vadd.f32 0.0, %v351
    %v353 = vpop.f32.mrf.mxu0
    %354 = vdwg.mxu0
    %v357 = vrot.slane %v352, 4
    %vm358 = vcmask 1043456
    %v359 = vsel %vm358, %v339, %v357
    %361 = vst [vmem:[#allocation9] sm:$0xff] %v359
    %362 = vst.sshfl [vmem:[#allocation1] sm:$0xff pattern:$0x75316420] %v339
    %363 = vst.sshfl [vmem:[#allocation1 + $0x8] sm:$0xff pattern:$0x75316420] %v352
    %s364 = scalar_lea.vmem [#allocation1], 1
    %v365 = vld [vmem:[%s364] ss:$2 sm:$0xff]
    %367 = vst [vmem:[#allocation10] sm:$0xff] %v365
    %s368 = sadd.s32 %s68, 1
    %s369 = smul.u32 %s368, 8
    %s370 = sld [smem:[#allocation6 + %s369]]
    %s371 = sadd.s32 %s369, 1
    %s372 = sld [smem:[#allocation6 + %s371]]
    %s373 = sadd.s32 %s369, 2
    %s374 = sld [smem:[#allocation6 + %s373]]
    %s375 = sadd.s32 %s369, 3
    %s376 = sld [smem:[#allocation6 + %s375]]
    %s377 = sadd.s32 %s369, 4
    %s378 = sld [smem:[#allocation6 + %s377]]
    %s379 = sadd.s32 %s369, 5
    %s380 = sld [smem:[#allocation6 + %s379]]
    %v381 = vstv %s370
    %v382 = vmul.f32 %v381, %v62
    %v383 = vstv %s372
    %v384 = vmul.f32 %v383, %v64
    %v385 = vadd.f32 %v382, %v384
    %v386 = vstv %s374
    %v387 = vadd.f32 %v385, %v386
    %v388 = vadd.f32 %v387, 1.0
    %v389 = vmul.f32 %v388, 3.5
    %v390 = vstv %s376
    %v391 = vmul.f32 %v390, %v62
    %v392 = vstv %s378
    %v393 = vmul.f32 %v392, %v64
    %v394 = vadd.f32 %v391, %v393
    %v395 = vstv %s380
    %v396 = vadd.f32 %v394, %v395
    %v397 = vadd.f32 %v396, 1.0
    %v398 = vmul.f32 %v397, 3.5
    %v400 = vperm.slane %v389, 0
    %v401 = vperm.slane %v389, 1
    %v404 = vsub.f32 %v400, %v67
    %v405 = vsub.f32 %v401, %v67
    %v406 = vand.u32 2147483647, %v404
    %v407 = vand.u32 2147483647, %v405
    %v408 = vsub.f32 1.0, %v406
    %v409 = vsub.f32 1.0, %v407
    %v410 = vmax.f32 %v408, 0.0
    %v411 = vmax.f32 %v409, 0.0
    %v412 = vpack.c.bf16 %v411, %v410
    %v414 = vperm.slane %v398, 0
    %v415 = vperm.slane %v398, 1
    %v418 = vsub.f32 %v414, %v67
    %v419 = vsub.f32 %v415, %v67
    %v420 = vand.u32 2147483647, %v418
    %v421 = vand.u32 2147483647, %v419
    %v422 = vsub.f32 1.0, %v420
    %v423 = vsub.f32 1.0, %v421
    %v424 = vmax.f32 %v422, 0.0
    %v425 = vmax.f32 %v423, 0.0
    %v426 = vpack.c.bf16 %v425, %v424
    %v428 = vrot.slane %v426, 3
    %v431 = vsel %vm129, %v426, %v428
    %v433 = vsel %vm134, %v426, %v428
    %v435 = vrot.slane %v433, 1
    %v436 = vsel %vm138, %v426, %v428
    %v438 = vrot.slane %v436, 2
    %v439 = vsel %vm142, %v426, %v428
    %v441 = vrot.slane %v439, 3
    %v442 = vunpack.i.l.s16 %v431
    %v443 = vunpack.i.h.s16 %v431
    %v444 = vunpack.i.l.s16 %v435
    %v445 = vunpack.i.h.s16 %v435
    %v446 = vunpack.i.l.s16 %v438
    %v447 = vunpack.i.h.s16 %v438
    %v448 = vunpack.i.l.s16 %v441
    %v449 = vunpack.i.h.s16 %v441
    %v450 = vpack.i.b16 %v442, %v442
    %v451 = vpack.i.b16 %v443, %v443
    %v452 = vpack.i.b16 %v444, %v444
    %v453 = vpack.i.b16 %v445, %v445
    %v454 = vpack.i.b16 %v446, %v446
    %v455 = vpack.i.b16 %v447, %v447
    %v456 = vpack.i.b16 %v448, %v448
    %v457 = vpack.i.b16 %v449, %v449
    %v458 = vperm.slane %v450, 0
    %v459 = vperm.slane %v450, 1
    %v460 = vperm.slane %v451, 0
    %v461 = vperm.slane %v451, 1
    %v462 = vperm.slane %v452, 0
    %v463 = vperm.slane %v452, 1
    %v464 = vperm.slane %v453, 0
    %v465 = vperm.slane %v453, 1
    %v466 = vperm.slane %v454, 0
    %v467 = vperm.slane %v454, 1
    %v468 = vperm.slane %v455, 0
    %v469 = vperm.slane %v455, 1
    %v470 = vperm.slane %v456, 0
    %v471 = vperm.slane %v456, 1
    %v472 = vperm.slane %v457, 0
    %v473 = vperm.slane %v457, 1
    %v475 = vpack.i.b16 %v458, %v458
    %v477 = vperm.slane %v475, 0
    %v479 = vpack.i.b16 %v459, %v459
    %v481 = vperm.slane %v479, 0
    %v483 = vpack.i.b16 %v460, %v460
    %v485 = vperm.slane %v483, 0
    %v487 = vpack.i.b16 %v461, %v461
    %v489 = vperm.slane %v487, 0
    %v491 = vpack.i.b16 %v462, %v462
    %v493 = vperm.slane %v491, 0
    %v495 = vpack.i.b16 %v463, %v463
    %v497 = vperm.slane %v495, 0
    %v499 = vpack.i.b16 %v464, %v464
    %v501 = vperm.slane %v499, 0
    %v503 = vpack.i.b16 %v465, %v465
    %v505 = vperm.slane %v503, 0
    %v507 = vpack.i.b16 %v466, %v466
    %v509 = vperm.slane %v507, 0
    %v511 = vpack.i.b16 %v467, %v467
    %v513 = vperm.slane %v511, 0
    %v515 = vpack.i.b16 %v468, %v468
    %v517 = vperm.slane %v515, 0
    %v519 = vpack.i.b16 %v469, %v469
    %v521 = vperm.slane %v519, 0
    %v523 = vpack.i.b16 %v470, %v470
    %v525 = vperm.slane %v523, 0
    %v527 = vpack.i.b16 %v471, %v471
    %v529 = vperm.slane %v527, 0
    %v531 = vpack.i.b16 %v472, %v472
    %v533 = vperm.slane %v531, 0
    %v535 = vpack.i.b16 %v473, %v473
    %v537 = vperm.slane %v535, 0
    %v538 = vunpack.c.l.bf16 %v477
    %v539 = vunpack.c.l.bf16 %v481
    %v540 = vunpack.c.l.bf16 %v485
    %v541 = vunpack.c.l.bf16 %v489
    %v542 = vunpack.c.l.bf16 %v493
    %v543 = vunpack.c.l.bf16 %v497
    %v544 = vunpack.c.l.bf16 %v501
    %v545 = vunpack.c.l.bf16 %v505
    %v546 = vunpack.c.l.bf16 %v509
    %v547 = vunpack.c.l.bf16 %v513
    %v548 = vunpack.c.l.bf16 %v517
    %v549 = vunpack.c.l.bf16 %v521
    %v550 = vunpack.c.l.bf16 %v525
    %v551 = vunpack.c.l.bf16 %v529
    %v552 = vunpack.c.l.bf16 %v533
    %v553 = vunpack.c.l.bf16 %v537
    %v554 = vunpack.c.l.bf16 %v412
    %v555 = vunpack.c.h.bf16 %v412
    %v556 = vmul.f32 %v538, %v554
    %v557 = vmul.f32 %v539, %v555
    %v558 = vmul.f32 %v540, %v554
    %v559 = vmul.f32 %v541, %v555
    %v560 = vmul.f32 %v542, %v554
    %v561 = vmul.f32 %v543, %v555
    %v562 = vmul.f32 %v544, %v554
    %v563 = vmul.f32 %v545, %v555
    %v564 = vmul.f32 %v546, %v554
    %v565 = vmul.f32 %v547, %v555
    %v566 = vmul.f32 %v548, %v554
    %v567 = vmul.f32 %v549, %v555
    %v568 = vmul.f32 %v550, %v554
    %v569 = vmul.f32 %v551, %v555
    %v570 = vmul.f32 %v552, %v554
    %v571 = vmul.f32 %v553, %v555
    %v572 = vpack.c.bf16 %v557, %v556
    %v573 = vpack.c.bf16 %v559, %v558
    %v574 = vpack.c.bf16 %v561, %v560
    %v575 = vpack.c.bf16 %v563, %v562
    %v576 = vpack.c.bf16 %v565, %v564
    %v577 = vpack.c.bf16 %v567, %v566
    %v578 = vpack.c.bf16 %v569, %v568
    %v579 = vpack.c.bf16 %v571, %v570
    %s580 = scalar_lea.vmem [#allocation2], 4
    %v581 = vld [vmem:[%s580] sm:$0xf]
    %v590 = vunpack.c.l.b16 %v572
    %v591 = vunpack.c.h.b16 %v572
    %v592 = vunpack.c.l.b16 %v573
    %v593 = vunpack.c.h.b16 %v573
    %v594 = vunpack.c.l.b16 %v574
    %v595 = vunpack.c.h.b16 %v574
    %v596 = vunpack.c.l.b16 %v575
    %v597 = vunpack.c.h.b16 %v575
    %v598 = vunpack.c.l.b16 %v576
    %v599 = vunpack.c.h.b16 %v576
    %v600 = vunpack.c.l.b16 %v577
    %v601 = vunpack.c.h.b16 %v577
    %v602 = vunpack.c.l.b16 %v578
    %v603 = vunpack.c.h.b16 %v578
    %v604 = vunpack.c.l.b16 %v579
    %v605 = vunpack.c.h.b16 %v579
    %v606 = vpack.c.b16 %v592, %v590
    %v607 = vpack.c.b16 %v593, %v591
    %v608 = vpack.c.b16 %v596, %v594
    %v609 = vpack.c.b16 %v597, %v595
    %v610 = vpack.c.b16 %v600, %v598
    %v611 = vpack.c.b16 %v601, %v599
    %v612 = vpack.c.b16 %v604, %v602
    %v613 = vpack.c.b16 %v605, %v603
    %v623 = vsel %vm325, %v581, 0
    %625 = vmatpush.bf16.msra.mxu0 0
    %626 = vmatpush.bf16.msra.mxu0 0
    %627 = vmatpush.bf16.msra.mxu0 0
    %628 = vmatpush.bf16.msra.mxu0 0
    %629 = vmatpush.bf16.msra.mxu0 %v612
    %630 = vmatpush.bf16.msra.mxu0 %v610
    %631 = vmatpush.bf16.msra.mxu0 %v608
    %632 = vmatpush.bf16.msra.mxu0 %v606
    %633 = vmatmul.bf16.gmra.mxu0 %v623
    %v634 = vpop.f32.mrf.mxu0
    %v635 = vadd.f32 0.0, %v634
    %v636 = vpop.f32.mrf.mxu0
    %637 = vdwg.mxu0
    %638 = vmatpush.bf16.msra.mxu0 0
    %639 = vmatpush.bf16.msra.mxu0 0
    %640 = vmatpush.bf16.msra.mxu0 0
    %641 = vmatpush.bf16.msra.mxu0 0
    %642 = vmatpush.bf16.msra.mxu0 %v613
    %643 = vmatpush.bf16.msra.mxu0 %v611
    %644 = vmatpush.bf16.msra.mxu0 %v609
    %645 = vmatpush.bf16.msra.mxu0 %v607
    %646 = vmatmul.bf16.gmra.mxu0 %v623
    %v647 = vpop.f32.mrf.mxu0
    %v648 = vadd.f32 0.0, %v647
    %v649 = vpop.f32.mrf.mxu0
    %650 = vdwg.mxu0
    %v653 = vrot.slane %v648, 4
    %v654 = vsel %vm358, %v635, %v653
    %s656 = scalar_lea.vmem [#allocation9], 8
    %657 = vst [vmem:[%s656] sm:$0xff] %v654
    %658 = vst.sshfl [vmem:[#allocation1] sm:$0xff pattern:$0x75316420] %v635
    %659 = vst.sshfl [vmem:[#allocation1 + $0x8] sm:$0xff pattern:$0x75316420] %v648
    %s660 = scalar_lea.vmem [#allocation1], 1
    %v661 = vld [vmem:[%s660] ss:$2 sm:$0xff]
    %s663 = scalar_lea.vmem [#allocation10], 8
    %664 = vst [vmem:[%s663] sm:$0xff] %v661
    // Predicated region
    $region26: #{tpu_custom_call.1} parent=1 // pred_check
      _
    $region27: #{tpu_custom_call.1} parent=1 // pred_check_branch
      %666 = sbr.rel (0) target = $region29
    $region28: #{tpu_custom_call.1} parent=1 // pred_region
      %668 = vsyncadd [#allocation4], 0
      %s669 = sshll.u32 [#allocation9], 4
      %s670 = int_to_ptr.vmem [resolvable:$true] %s669
      %s671 = sshll.u32 %s3, 4
      %s672 = int_to_ptr.hbm [resolvable:$true] %s671
      %677 = dma.vmem_to_hbm [thread:$0]  %s670, 256, %s672, [#allocation4], 128, 128, 8
    $region29: #{tpu_custom_call.1} parent=1 // pred_fallthru
      _
    // Predicated region
    $region30: #{tpu_custom_call.1} parent=1 // pred_check
      _
    $region31: #{tpu_custom_call.1} parent=1 // pred_check_branch
      %679 = sbr.rel (0) target = $region33
    $region32: #{tpu_custom_call.1} parent=1 // pred_region
      %681 = vsyncadd [#allocation11], 0
      %s682 = sshll.u32 [#allocation10], 4
      %s683 = int_to_ptr.vmem [resolvable:$true] %s682
      %s684 = sshll.u32 %s4, 4
      %s685 = int_to_ptr.hbm [resolvable:$true] %s684
      %690 = dma.vmem_to_hbm [thread:$0]  %s683, 256, %s685, [#allocation11], 128, 128, 8
    $region33: #{tpu_custom_call.1} parent=1 // pred_fallthru
      _
    // Predicated region
    $region34: #{tpu_custom_call.1} parent=1 // pred_check
      _
    $region35: #{tpu_custom_call.1} parent=1 // pred_check_branch
      %692 = sbr.rel (0) target = $region37
    $region36: #{tpu_custom_call.1} parent=1 // pred_region
      %694 = dma.done [#allocation4], 256
    $region37: #{tpu_custom_call.1} parent=1 // pred_fallthru
      _
    // Predicated region
    $region38: #{tpu_custom_call.1} parent=1 // pred_check
      _
    $region39: #{tpu_custom_call.1} parent=1 // pred_check_branch
      %696 = sbr.rel (0) target = $region41
    $region40: #{tpu_custom_call.1} parent=1 // pred_region
      %698 = dma.done [#allocation11], 256
    $region41: #{tpu_custom_call.1} parent=1 // pred_fallthru
      _
    %699 = vsyncpa [#allocation3], 1
    %700 = vsyncpa [#allocation8], 1
    %701 = vsyncpa [#allocation4], 1
    %702 = vsyncpa [#allocation11], 1
    %703 = vsyncpa [#allocation5], 1

</llo_original>
